<compile_context>
chip_gen: v7x
topology: tpu7x:2x2x1
jax: 0.10.0
libtpu: 0.0.40
codegen_flags: <defaults>
</compile_context>

<pallas_src>
import functools

import jax
import jax.numpy as jnp
from jax.experimental import pallas as pl
from jax.experimental.pallas import tpu as pltpu


def _round_up(n, m):
    return ((n + m - 1) // m) * m


def rnn_cell_kernel(x_ref, h_ref, wx_ref, wh_ref, bhl_ref, wlo_ref, blo_ref,
                    out_ref, hid_ref):
    """Fused RNN cell, all tiles VMEM-resident:

        [hidden | l] = x @ Wx + h @ Wh + b_hl      (single fused first stage)
        output       = l @ W_l2o + b_l2o
    """
    hp = hid_ref.shape[1]  # padded hidden size (static)

    hl = (jnp.dot(x_ref[...], wx_ref[...], preferred_element_type=jnp.float32)
          + jnp.dot(h_ref[...], wh_ref[...], preferred_element_type=jnp.float32)
          + bhl_ref[...])

    # First half of the fused N axis is the new hidden state (lane-aligned slice).
    hid_ref[...] = hl[:, :hp].astype(hid_ref.dtype)

    # Second half is `l`, which feeds the output projection.
    l = hl[:, hp:]
    out = jnp.dot(l, wlo_ref[...], preferred_element_type=jnp.float32) + blo_ref[...]
    out_ref[...] = out.astype(out_ref.dtype)


def prepare_params(params, input_size, hidden_size, output_size):
    """One-time prep: fuse i2h/i2l along N, split rows into x-part / h-part,
    zero-pad feature dims to multiples of 128 (lane-dense)."""
    w_i2h, b_i2h, w_i2l, b_i2l, w_l2o, b_l2o = params
    hp = _round_up(hidden_size, 128)
    op = _round_up(output_size, 128)

    def pad_cols(a, n_to):
        return jnp.pad(a, ((0, 0), (0, n_to - a.shape[1])))

    # Fused first-stage weight: (in+hidden, 2*hp), each half padded to hp lanes.
    w_hl = jnp.concatenate([pad_cols(w_i2h, hp), pad_cols(w_i2l, hp)], axis=1)
    b_hl = jnp.concatenate([pad_cols(b_i2h, hp), pad_cols(b_i2l, hp)], axis=1)

    # Split K into input rows and hidden rows (removes the wrapper concat).
    w_x = w_hl[:input_size]                                           # (in, 2*hp)
    w_h = jnp.pad(w_hl[input_size:], ((0, hp - hidden_size), (0, 0)))  # (hp, 2*hp)

    # Output projection padded to (hp, op).
    w_lo = jnp.pad(w_l2o, ((0, hp - hidden_size), (0, op - output_size)))
    b_lo = pad_cols(b_l2o, op)
    return (w_x, w_h, b_hl, w_lo, b_lo)


def rnn_forward(input_tensor, hidden_tensor, prepped, hidden_size, output_size):
    """Mirror of RNN.forward: returns (output, hidden)."""
    w_x, w_h, b_hl, w_lo, b_lo = prepped
    batch = input_tensor.shape[0]
    bp = _round_up(batch, 8)          # sublane-aligned batch
    hp = w_lo.shape[0]                # padded hidden
    op = w_lo.shape[1]                # padded output

    x_p = jnp.pad(input_tensor, ((0, bp - batch), (0, 0)))
    h_p = jnp.pad(hidden_tensor,
                  ((0, bp - batch), (0, hp - hidden_tensor.shape[1])))

    vmem = pl.BlockSpec(memory_space=pltpu.MemorySpace.VMEM)

    out_p, hid_p = pl.pallas_call(
        rnn_cell_kernel,
        out_shape=(
            jax.ShapeDtypeStruct((bp, op), jnp.float32),
            jax.ShapeDtypeStruct((bp, hp), jnp.float32),
        ),
        in_specs=[vmem] * 7,
        out_specs=(vmem, vmem),
    )(x_p, h_p, w_x, w_h, b_hl, w_lo, b_lo)

    return out_p[:batch, :output_size], hid_p[:batch, :hidden_size]


def init_params(key, input_size, hidden_size, output_size):
    """Deterministic param init matching torch nn.Linear shapes:
    weight stored as (in, out), bias as (1, out)."""
    k = jax.random.split(key, 6)
    comb = input_size + hidden_size

    def uniform(kk, shape, fan_in):
        bound = 1.0 / jnp.sqrt(jnp.float32(fan_in))
        return jax.random.uniform(kk, shape, jnp.float32, -bound, bound)

    w_i2h = uniform(k[0], (comb, hidden_size), comb)
    b_i2h = uniform(k[1], (1, hidden_size), comb)
    w_i2l = uniform(k[2], (comb, hidden_size), comb)
    b_i2l = uniform(k[3], (1, hidden_size), comb)
    w_l2o = uniform(k[4], (hidden_size, output_size), hidden_size)
    b_l2o = uniform(k[5], (1, output_size), hidden_size)
    return (w_i2h, b_i2h, w_i2l, b_i2l, w_l2o, b_l2o)


if __name__ == "__main__":
    input_size, hidden_size, output_size = 4, 32, 8
    batch = 2

    key = jax.random.PRNGKey(0)
    k_params, k_x = jax.random.split(key, 2)

    params = init_params(k_params, input_size, hidden_size, output_size)
    prepped = prepare_params(params, input_size, hidden_size, output_size)

    x = jax.random.normal(k_x, (batch, input_size), jnp.float32)
    h0 = jnp.zeros((batch, hidden_size), jnp.float32)  # matches init_hidden semantics

    fwd = jax.jit(functools.partial(rnn_forward,
                                    hidden_size=hidden_size,
                                    output_size=output_size))
    output, hidden = fwd(x, h0, prepped)
    jax.block_until_ready((output, hidden))

    # Reference check against plain-JAX math (same semantics as the torch module).
    w_i2h, b_i2h, w_i2l, b_i2l, w_l2o, b_l2o = params
    combined = jnp.concatenate([x, h0], axis=1)
    ref_hidden = combined @ w_i2h + b_i2h
    ref_l = combined @ w_i2l + b_i2l
    ref_output = ref_l @ w_l2o + b_l2o

    assert output.shape == (batch, output_size)
    assert hidden.shape == (batch, hidden_size)
    assert jnp.allclose(output, ref_output, atol=1e-5)
    assert jnp.allclose(hidden, ref_hidden, atol=1e-5)

    print("KERNEL_OK")
</pallas_src>

<mosaic_0001>
module attributes {stable_mosaic.version = 11 : i64} {
  func.func @rnn_cell_kernel(%arg0: memref<8x4xf32, #tpu.memory_space<vmem>>, %arg1: memref<8x128xf32, #tpu.memory_space<vmem>>, %arg2: memref<4x256xf32, #tpu.memory_space<vmem>>, %arg3: memref<128x256xf32, #tpu.memory_space<vmem>>, %arg4: memref<1x256xf32, #tpu.memory_space<vmem>>, %arg5: memref<128x128xf32, #tpu.memory_space<vmem>>, %arg6: memref<1x128xf32, #tpu.memory_space<vmem>>, %arg7: memref<8x128xf32, #tpu.memory_space<vmem>>, %arg8: memref<8x128xf32, #tpu.memory_space<vmem>>) attributes {dimension_semantics = [], scalar_prefetch = 0 : i64, scratch_operands = 0 : i64, tpu.core_type = #tpu.core_type<tc>} {
    %c0 = arith.constant 0 : index
    %c0_0 = arith.constant 0 : index
    %0 = vector.load %arg0[%c0, %c0_0] : memref<8x4xf32, #tpu.memory_space<vmem>>, vector<8x4xf32>
    %c0_1 = arith.constant 0 : index
    %c0_2 = arith.constant 0 : index
    %1 = vector.load %arg2[%c0_1, %c0_2] : memref<4x256xf32, #tpu.memory_space<vmem>>, vector<4x256xf32>
    %cst = arith.constant dense<0.000000e+00> : vector<8x256xf32>
    %2 = tpu.matmul %0, %1, %cst {dimension_numbers = #tpu.dot_dimension_numbers<[1], [0], [0], [1], [0, 0, 1, 1], [], []>} : vector<8x4xf32>, vector<4x256xf32>, vector<8x256xf32> -> vector<8x256xf32>
    %c0_3 = arith.constant 0 : index
    %c0_4 = arith.constant 0 : index
    %3 = vector.load %arg1[%c0_3, %c0_4] : memref<8x128xf32, #tpu.memory_space<vmem>>, vector<8x128xf32>
    %c0_5 = arith.constant 0 : index
    %c0_6 = arith.constant 0 : index
    %4 = vector.load %arg3[%c0_5, %c0_6] : memref<128x256xf32, #tpu.memory_space<vmem>>, vector<128x256xf32>
    %cst_7 = arith.constant dense<0.000000e+00> : vector<8x256xf32>
    %5 = tpu.matmul %3, %4, %cst_7 {dimension_numbers = #tpu.dot_dimension_numbers<[1], [0], [0], [1], [0, 0, 1, 1], [], []>} : vector<8x128xf32>, vector<128x256xf32>, vector<8x256xf32> -> vector<8x256xf32>
    %6 = arith.addf %2, %5 : vector<8x256xf32>
    %c0_8 = arith.constant 0 : index
    %c0_9 = arith.constant 0 : index
    %7 = vector.load %arg4[%c0_8, %c0_9] : memref<1x256xf32, #tpu.memory_space<vmem>>, vector<1x256xf32>
    %8 = vector.broadcast %7 : vector<1x256xf32> to vector<8x256xf32>
    %9 = arith.addf %6, %8 : vector<8x256xf32>
    %10 = vector.extract_strided_slice %9 {offsets = [0, 0], sizes = [8, 128], strides = [1, 1]} : vector<8x256xf32> to vector<8x128xf32>
    %c0_10 = arith.constant 0 : index
    %c0_11 = arith.constant 0 : index
    %11 = vector.load %arg8[%c0_10, %c0_11] : memref<8x128xf32, #tpu.memory_space<vmem>>, vector<8x128xf32>
    tpu.vector_store %arg8[%c0_10, %c0_11], %10 {strides = array<i32>} : memref<8x128xf32, #tpu.memory_space<vmem>>, vector<8x128xf32>,
    %12 = vector.extract_strided_slice %9 {offsets = [0, 128], sizes = [8, 128], strides = [1, 1]} : vector<8x256xf32> to vector<8x128xf32>
    %c0_12 = arith.constant 0 : index
    %c0_13 = arith.constant 0 : index
    %13 = vector.load %arg5[%c0_12, %c0_13] : memref<128x128xf32, #tpu.memory_space<vmem>>, vector<128x128xf32>
    %cst_14 = arith.constant dense<0.000000e+00> : vector<8x128xf32>
    %14 = tpu.matmul %12, %13, %cst_14 {dimension_numbers = #tpu.dot_dimension_numbers<[1], [0], [0], [1], [0, 0, 1, 1], [], []>} : vector<8x128xf32>, vector<128x128xf32>, vector<8x128xf32> -> vector<8x128xf32>
    %c0_15 = arith.constant 0 : index
    %c0_16 = arith.constant 0 : index
    %15 = vector.load %arg6[%c0_15, %c0_16] : memref<1x128xf32, #tpu.memory_space<vmem>>, vector<1x128xf32>
    %16 = vector.broadcast %15 : vector<1x128xf32> to vector<8x128xf32>
    %17 = arith.addf %14, %16 : vector<8x128xf32>
    %c0_17 = arith.constant 0 : index
    %c0_18 = arith.constant 0 : index
    %18 = vector.load %arg7[%c0_17, %c0_18] : memref<8x128xf32, #tpu.memory_space<vmem>>, vector<8x128xf32>
    tpu.vector_store %arg7[%c0_17, %c0_18], %17 {strides = array<i32>} : memref<8x128xf32, #tpu.memory_space<vmem>>, vector<8x128xf32>,
    return
  }
}

</mosaic_0001>

<llo_original>
// kernel: rnn_forward.1
$region0: #{rnn_forward.1}
  #allocation0 [shape = 'u32[]', space=smem, size = 0x4, offset = 0x4, fixed_abs, tag = 'smem constant byte address 0x4 - core index']
  #allocation1 [shape = 'u32[144,128]{1,0:T(1,128)}', space=vmem, size = 0x12000, scoped, tag = 'internal scratch']
  %s0 = inlined_call_operand.vmem [shape: f32[8,4], index: 0, kind: input, shape index: {}]
  %s1 = inlined_call_operand.vmem [shape: f32[8,128], index: 1, kind: input, shape index: {}]
  %s2 = inlined_call_operand.vmem [shape: f32[4,256], index: 2, kind: input, shape index: {}]
  %s3 = inlined_call_operand.hbm [shape: f32[128,256], index: 3, kind: input, shape index: {}]
  %s4 = inlined_call_operand.vmem [shape: f32[1,256], index: 4, kind: input, shape index: {}]
  %s5 = inlined_call_operand.hbm [shape: f32[128,128], index: 5, kind: input, shape index: {}]
  %s6 = inlined_call_operand.vmem [shape: f32[1,128], index: 6, kind: input, shape index: {}]
  %s7 = inlined_call_operand.vmem [shape: f32[8,128], index: 7, kind: output, shape index: {0}]
  %s8 = inlined_call_operand.vmem [shape: f32[8,128], index: 8, kind: output, shape index: {1}]
  %9 = xla_tuple %s7, %s8
  %s10 = sld [smem:[#allocation0]]
  $region54: #{rnn_forward.1} parent=0
    _
  %s12 = ssub.s32 1, %s10
  %s13 = scalar_select 0, %s12, %s10
  $region1: #{rnn_forward.1} parent=0
    #allocation2 [shape = 'u8[131072]{0}', space=vmem, size = 0x20000, scoped, tag = 'input window, operand 3, single buffered']
    #allocation3 [shape = 's32[1]{0}', space=sflag, size = 0x4, scoped, tag = 'scoped memory for rnn_forward.1']
    #allocation4 [shape = 'u8[65536]{0}', space=vmem, size = 0x10000, scoped, tag = 'input window, operand 5, single buffered']
    #allocation5 [shape = 's32[1]{0}', space=sflag, size = 0x4, scoped, tag = 'scoped memory for rnn_forward.1']
    %14 = vsyncpa [#allocation3], 0
    %15 = vsyncpa [#allocation5], 0
    // Predicated region
    $region2: #{rnn_forward.1} parent=1 // pred_check
      _
    $region3: #{rnn_forward.1} parent=1 // pred_check_branch
      %17 = sbr.rel (0) target = $region5
    $region4: #{rnn_forward.1} parent=1 // pred_region
      _
    $region5: #{rnn_forward.1} parent=1 // pred_fallthru
      _
    // Predicated region
    $region6: #{rnn_forward.1} parent=1 // pred_check
      _
    $region7: #{rnn_forward.1} parent=1 // pred_check_branch
      %19 = sbr.rel (0) target = $region9
    $region8: #{rnn_forward.1} parent=1 // pred_region
      _
    $region9: #{rnn_forward.1} parent=1 // pred_fallthru
      _
    // Predicated region
    $region10: #{rnn_forward.1} parent=1 // pred_check
      _
    $region11: #{rnn_forward.1} parent=1 // pred_check_branch
      %21 = sbr.rel (0) target = $region13
    $region12: #{rnn_forward.1} parent=1 // pred_region
      _
    $region13: #{rnn_forward.1} parent=1 // pred_fallthru
      _
    // Predicated region
    $region14: #{rnn_forward.1} parent=1 // pred_check
      _
    $region15: #{rnn_forward.1} parent=1 // pred_check_branch
      %23 = sbr.rel (0) target = $region17
    $region16: #{rnn_forward.1} parent=1 // pred_region
      %s25 = ssub.s32 4096, 4096
      %26 = vsyncadd [#allocation3], %s25
      %s27 = sshll.u32 [#allocation2], 4
      %s28 = int_to_ptr.vmem [resolvable:$true] %s27
      %33 = dma.hbm_to_vmem [thread:$0]  %s3, 4096, %s28, [#allocation3], 256, 256, 16
    $region17: #{rnn_forward.1} parent=1 // pred_fallthru
      _
    // Predicated region
    $region18: #{rnn_forward.1} parent=1 // pred_check
      _
    $region19: #{rnn_forward.1} parent=1 // pred_check_branch
      %35 = sbr.rel (0) target = $region21
    $region20: #{rnn_forward.1} parent=1 // pred_region
      _
    $region21: #{rnn_forward.1} parent=1 // pred_fallthru
      _
    // Predicated region
    $region22: #{rnn_forward.1} parent=1 // pred_check
      _
    $region23: #{rnn_forward.1} parent=1 // pred_check_branch
      %37 = sbr.rel (0) target = $region25
    $region24: #{rnn_forward.1} parent=1 // pred_region
      %s39 = ssub.s32 2048, 2048
      %40 = vsyncadd [#allocation5], %s39
      %s41 = sshll.u32 [#allocation4], 4
      %s42 = int_to_ptr.vmem [resolvable:$true] %s41
      %47 = dma.hbm_to_vmem [thread:$0]  %s5, 2048, %s42, [#allocation5], 128, 128, 8
    $region25: #{rnn_forward.1} parent=1 // pred_fallthru
      _
    // Predicated region
    $region26: #{rnn_forward.1} parent=1 // pred_check
      _
    $region27: #{rnn_forward.1} parent=1 // pred_check_branch
      %49 = sbr.rel (0) target = $region29
    $region28: #{rnn_forward.1} parent=1 // pred_region
      _
    $region29: #{rnn_forward.1} parent=1 // pred_fallthru
      _
    // Predicated region
    $region30: #{rnn_forward.1} parent=1 // pred_check
      _
    $region31: #{rnn_forward.1} parent=1 // pred_check_branch
      %51 = sbr.rel (0) target = $region33
    $region32: #{rnn_forward.1} parent=1 // pred_region
      %52 = dma.done [#allocation3], 4096
    $region33: #{rnn_forward.1} parent=1 // pred_fallthru
      _
    // Predicated region
    $region34: #{rnn_forward.1} parent=1 // pred_check
      _
    $region35: #{rnn_forward.1} parent=1 // pred_check_branch
      %54 = sbr.rel (0) target = $region37
    $region36: #{rnn_forward.1} parent=1 // pred_region
      %55 = dma.done [#allocation5], 2048
    $region37: #{rnn_forward.1} parent=1 // pred_fallthru
      _
    %v56 = vld [vmem:[%s0] sm:$0xff]
    %v57 = vld [vmem:[%s2] sm:$0xff]
    %v58 = vld [vmem:[%s1] sm:$0xff]
    %v59 = vld [vmem:[#allocation2] sm:$0xff]
    %v60 = vld [vmem:[#allocation2 + $0x8] sm:$0xff]
    %v61 = vld [vmem:[#allocation2 + $0x10] sm:$0xff]
    %v62 = vld [vmem:[#allocation2 + $0x18] sm:$0xff]
    %v63 = vld [vmem:[#allocation2 + $0x20] sm:$0xff]
    %v64 = vld [vmem:[#allocation2 + $0x28] sm:$0xff]
    %v65 = vld [vmem:[#allocation2 + $0x30] sm:$0xff]
    %v66 = vld [vmem:[#allocation2 + $0x38] sm:$0xff]
    %v67 = vld [vmem:[#allocation2 + $0x40] sm:$0xff]
    %v68 = vld [vmem:[#allocation2 + $0x48] sm:$0xff]
    %v69 = vld [vmem:[#allocation2 + $0x50] sm:$0xff]
    %v70 = vld [vmem:[#allocation2 + $0x58] sm:$0xff]
    %v71 = vld [vmem:[#allocation2 + $0x60] sm:$0xff]
    %v72 = vld [vmem:[#allocation2 + $0x68] sm:$0xff]
    %v73 = vld [vmem:[#allocation2 + $0x70] sm:$0xff]
    %v74 = vld [vmem:[#allocation2 + $0x78] sm:$0xff]
    %v75 = vld [vmem:[#allocation2 + $0x80] sm:$0xff]
    %v76 = vld [vmem:[#allocation2 + $0x88] sm:$0xff]
    %v77 = vld [vmem:[#allocation2 + $0x90] sm:$0xff]
    %v78 = vld [vmem:[#allocation2 + $0x98] sm:$0xff]
    %v79 = vld [vmem:[#allocation2 + $0xa0] sm:$0xff]
    %v80 = vld [vmem:[#allocation2 + $0xa8] sm:$0xff]
    %v81 = vld [vmem:[#allocation2 + $0xb0] sm:$0xff]
    %v82 = vld [vmem:[#allocation2 + $0xb8] sm:$0xff]
    %v83 = vld [vmem:[#allocation2 + $0xc0] sm:$0xff]
    %v84 = vld [vmem:[#allocation2 + $0xc8] sm:$0xff]
    %v85 = vld [vmem:[#allocation2 + $0xd0] sm:$0xff]
    %v86 = vld [vmem:[#allocation2 + $0xd8] sm:$0xff]
    %v87 = vld [vmem:[#allocation2 + $0xe0] sm:$0xff]
    %v88 = vld [vmem:[#allocation2 + $0xe8] sm:$0xff]
    %v89 = vld [vmem:[#allocation2 + $0xf0] sm:$0xff]
    %v90 = vld [vmem:[#allocation2 + $0xf8] sm:$0xff]
    %91 = vmatprep.subr.mxu0 %v60
    %92 = vmatpush1.msra.mxu0 %v59
    %93 = vmatprep.subr.mxu0 %v62
    %94 = vmatpush1.msra.mxu0 %v61
    %95 = vmatprep.subr.mxu0 %v64
    %96 = vmatpush1.msra.mxu0 %v63
    %97 = vmatprep.subr.mxu0 %v66
    %98 = vmatpush1.msra.mxu0 %v65
    %99 = vmatprep.subr.mxu0 %v68
    %100 = vmatpush1.msra.mxu0 %v67
    %101 = vmatprep.subr.mxu0 %v70
    %102 = vmatpush1.msra.mxu0 %v69
    %103 = vmatprep.subr.mxu0 %v72
    %104 = vmatpush1.msra.mxu0 %v71
    %105 = vmatprep.subr.mxu0 %v74
    %106 = vmatpush1.msra.mxu0 %v73
    %107 = vmatprep.subr.mxu0 %v76
    %108 = vmatpush1.msra.mxu0 %v75
    %109 = vmatprep.subr.mxu0 %v78
    %110 = vmatpush1.msra.mxu0 %v77
    %111 = vmatprep.subr.mxu0 %v80
    %112 = vmatpush1.msra.mxu0 %v79
    %113 = vmatprep.subr.mxu0 %v82
    %114 = vmatpush1.msra.mxu0 %v81
    %115 = vmatprep.subr.mxu0 %v84
    %116 = vmatpush1.msra.mxu0 %v83
    %117 = vmatprep.subr.mxu0 %v86
    %118 = vmatpush1.msra.mxu0 %v85
    %119 = vmatprep.subr.mxu0 %v88
    %120 = vmatpush1.msra.mxu0 %v87
    %121 = vmatprep.subr.mxu0 %v90
    %122 = vmatpush1.msra.mxu0 %v89
    %123 = vmatprep.subr.mxu0 0.0
    %124 = vmatpush1.msra.mxu0 0.0
    %125 = vmatprep.subr.mxu0 0.0
    %126 = vmatpush1.msra.mxu0 0.0
    %127 = vmatprep.subr.mxu0 0.0
    %128 = vmatpush1.msra.mxu0 0.0
    %129 = vmatprep.subr.mxu0 0.0
    %130 = vmatpush1.msra.mxu0 0.0
    %131 = vmatprep.subr.mxu0 0.0
    %132 = vmatpush1.msra.mxu0 0.0
    %133 = vmatprep.subr.mxu0 0.0
    %134 = vmatpush1.msra.mxu0 0.0
    %135 = vmatprep.subr.mxu0 0.0
    %136 = vmatpush1.msra.mxu0 0.0
    %137 = vmatprep.subr.mxu0 0.0
    %138 = vmatpush1.msra.mxu0 0.0
    %139 = vmatprep.subr.mxu0 0.0
    %140 = vmatpush1.msra.mxu0 0.0
    %141 = vmatprep.subr.mxu0 0.0
    %142 = vmatpush1.msra.mxu0 0.0
    %143 = vmatprep.subr.mxu0 0.0
    %144 = vmatpush1.msra.mxu0 0.0
    %145 = vmatprep.subr.mxu0 0.0
    %146 = vmatpush1.msra.mxu0 0.0
    %147 = vmatprep.subr.mxu0 0.0
    %148 = vmatpush1.msra.mxu0 0.0
    %149 = vmatprep.subr.mxu0 0.0
    %150 = vmatpush1.msra.mxu0 0.0
    %151 = vmatprep.subr.mxu0 0.0
    %152 = vmatpush1.msra.mxu0 0.0
    %153 = vmatprep.subr.mxu0 0.0
    %154 = vmatpush1.msra.mxu0 0.0
    %155 = vmatprep.mubr.f32.mxu0 0.0
    %156 = vmatmul.mubr.f32.gmra.mrb[0].mxu0 %v58
    %v157 = vpop.f32.mrb[0].mxu0
    %v158 = vadd.f32 0.0, %v157
    %v159 = vpop.f32.mrb[0].mxu0
    %v160 = vadd.f32 0.0, %v159
    %161 = vdwg.mxu0
    %v163 = vcombine.high %v57, %v57
    %vm164 = vcmask 31744
    %v166 = vsel %vm164, %v56, 0
    %vm168 = vcmask 1043456
    %v169 = vsel %vm168, %v57, 0
    %v171 = vsel %vm168, %v163, 0
    %173 = vmatprep.subr.mxu0 %v171
    %174 = vmatpush1.msra.mxu0 %v169
    %175 = vmatprep.subr.mxu0 0.0
    %176 = vmatpush1.msra.mxu0 0.0
    %177 = vmatprep.subr.mxu0 0.0
    %178 = vmatpush1.msra.mxu0 0.0
    %179 = vmatprep.subr.mxu0 0.0
    %180 = vmatpush1.msra.mxu0 0.0
    %181 = vmatprep.subr.mxu0 0.0
    %182 = vmatpush1.msra.mxu0 0.0
    %183 = vmatprep.subr.mxu0 0.0
    %184 = vmatpush1.msra.mxu0 0.0
    %185 = vmatprep.subr.mxu0 0.0
    %186 = vmatpush1.msra.mxu0 0.0
    %187 = vmatprep.subr.mxu0 0.0
    %188 = vmatpush1.msra.mxu0 0.0
    %189 = vmatprep.subr.mxu0 0.0
    %190 = vmatpush1.msra.mxu0 0.0
    %191 = vmatprep.subr.mxu0 0.0
    %192 = vmatpush1.msra.mxu0 0.0
    %193 = vmatprep.subr.mxu0 0.0
    %194 = vmatpush1.msra.mxu0 0.0
    %195 = vmatprep.subr.mxu0 0.0
    %196 = vmatpush1.msra.mxu0 0.0
    %197 = vmatprep.subr.mxu0 0.0
    %198 = vmatpush1.msra.mxu0 0.0
    %199 = vmatprep.subr.mxu0 0.0
    %200 = vmatpush1.msra.mxu0 0.0
    %201 = vmatprep.subr.mxu0 0.0
    %202 = vmatpush1.msra.mxu0 0.0
    %203 = vmatprep.subr.mxu0 0.0
    %204 = vmatpush1.msra.mxu0 0.0
    %205 = vmatprep.subr.mxu0 0.0
    %206 = vmatpush1.msra.mxu0 0.0
    %207 = vmatprep.subr.mxu0 0.0
    %208 = vmatpush1.msra.mxu0 0.0
    %209 = vmatprep.subr.mxu0 0.0
    %210 = vmatpush1.msra.mxu0 0.0
    %211 = vmatprep.subr.mxu0 0.0
    %212 = vmatpush1.msra.mxu0 0.0
    %213 = vmatprep.subr.mxu0 0.0
    %214 = vmatpush1.msra.mxu0 0.0
    %215 = vmatprep.subr.mxu0 0.0
    %216 = vmatpush1.msra.mxu0 0.0
    %217 = vmatprep.subr.mxu0 0.0
    %218 = vmatpush1.msra.mxu0 0.0
    %219 = vmatprep.subr.mxu0 0.0
    %220 = vmatpush1.msra.mxu0 0.0
    %221 = vmatprep.subr.mxu0 0.0
    %222 = vmatpush1.msra.mxu0 0.0
    %223 = vmatprep.subr.mxu0 0.0
    %224 = vmatpush1.msra.mxu0 0.0
    %225 = vmatprep.subr.mxu0 0.0
    %226 = vmatpush1.msra.mxu0 0.0
    %227 = vmatprep.subr.mxu0 0.0
    %228 = vmatpush1.msra.mxu0 0.0
    %229 = vmatprep.subr.mxu0 0.0
    %230 = vmatpush1.msra.mxu0 0.0
    %231 = vmatprep.subr.mxu0 0.0
    %232 = vmatpush1.msra.mxu0 0.0
    %233 = vmatprep.subr.mxu0 0.0
    %234 = vmatpush1.msra.mxu0 0.0
    %235 = vmatprep.subr.mxu0 0.0
    %236 = vmatpush1.msra.mxu0 0.0
    %237 = vmatprep.mubr.f32.mxu0 0.0
    %238 = vmatmul.mubr.f32.gmra.mrb[0].mxu0 %v166
    %v239 = vpop.f32.mrb[0].mxu0
    %v240 = vadd.f32 %v158, %v239
    %v241 = vpop.f32.mrb[0].mxu0
    %v242 = vadd.f32 %v160, %v241
    %243 = vdwg.mxu0
    %v244 = vld [vmem:[%s4] sm:$0x3]
    %v246 = vlaneseq
    %v247 = vshrl.u32 %v246, 7
    %v248 = vsub.s32 0, %v247
    %v249 = vrot.slane %v244, %v248
    %v250 = vlaneseq
    %v251 = vshrl.u32 %v250, 7
    %v252 = vsub.s32 1, %v251
    %v253 = vrot.slane %v244, %v252
    %v256 = vadd.f32 %v240, %v249
    %v257 = vadd.f32 %v242, %v253
    %258 = vst [vmem:[%s8] sm:$0xff] %v256
    %v259 = vld [vmem:[#allocation4] sm:$0xff]
    %v260 = vld [vmem:[#allocation4 + $0x8] sm:$0xff]
    %v261 = vld [vmem:[#allocation4 + $0x10] sm:$0xff]
    %v262 = vld [vmem:[#allocation4 + $0x18] sm:$0xff]
    %v263 = vld [vmem:[#allocation4 + $0x20] sm:$0xff]
    %v264 = vld [vmem:[#allocation4 + $0x28] sm:$0xff]
    %v265 = vld [vmem:[#allocation4 + $0x30] sm:$0xff]
    %v266 = vld [vmem:[#allocation4 + $0x38] sm:$0xff]
    %v267 = vld [vmem:[#allocation4 + $0x40] sm:$0xff]
    %v268 = vld [vmem:[#allocation4 + $0x48] sm:$0xff]
    %v269 = vld [vmem:[#allocation4 + $0x50] sm:$0xff]
    %v270 = vld [vmem:[#allocation4 + $0x58] sm:$0xff]
    %v271 = vld [vmem:[#allocation4 + $0x60] sm:$0xff]
    %v272 = vld [vmem:[#allocation4 + $0x68] sm:$0xff]
    %v273 = vld [vmem:[#allocation4 + $0x70] sm:$0xff]
    %v274 = vld [vmem:[#allocation4 + $0x78] sm:$0xff]
    %v275 = vld [vmem:[%s6] sm:$0x1]
    %v277 = vlaneseq
    %v278 = vshrl.u32 %v277, 7
    %v279 = vsub.s32 0, %v278
    %v280 = vrot.slane %v275, %v279
    %282 = vmatprep.subr.mxu0 0.0
    %283 = vmatpush1.msra.mxu0 %v259
    %284 = vmatprep.subr.mxu0 0.0
    %285 = vmatpush1.msra.mxu0 %v260
    %286 = vmatprep.subr.mxu0 0.0
    %287 = vmatpush1.msra.mxu0 %v261
    %288 = vmatprep.subr.mxu0 0.0
    %289 = vmatpush1.msra.mxu0 %v262
    %290 = vmatprep.subr.mxu0 0.0
    %291 = vmatpush1.msra.mxu0 %v263
    %292 = vmatprep.subr.mxu0 0.0
    %293 = vmatpush1.msra.mxu0 %v264
    %294 = vmatprep.subr.mxu0 0.0
    %295 = vmatpush1.msra.mxu0 %v265
    %296 = vmatprep.subr.mxu0 0.0
    %297 = vmatpush1.msra.mxu0 %v266
    %298 = vmatprep.subr.mxu0 0.0
    %299 = vmatpush1.msra.mxu0 %v267
    %300 = vmatprep.subr.mxu0 0.0
    %301 = vmatpush1.msra.mxu0 %v268
    %302 = vmatprep.subr.mxu0 0.0
    %303 = vmatpush1.msra.mxu0 %v269
    %304 = vmatprep.subr.mxu0 0.0
    %305 = vmatpush1.msra.mxu0 %v270
    %306 = vmatprep.subr.mxu0 0.0
    %307 = vmatpush1.msra.mxu0 %v271
    %308 = vmatprep.subr.mxu0 0.0
    %309 = vmatpush1.msra.mxu0 %v272
    %310 = vmatprep.subr.mxu0 0.0
    %311 = vmatpush1.msra.mxu0 %v273
    %312 = vmatprep.subr.mxu0 0.0
    %313 = vmatpush1.msra.mxu0 %v274
    %314 = vmatprep.subr.mxu0 0.0
    %315 = vmatpush1.msra.mxu0 0.0
    %316 = vmatprep.subr.mxu0 0.0
    %317 = vmatpush1.msra.mxu0 0.0
    %318 = vmatprep.subr.mxu0 0.0
    %319 = vmatpush1.msra.mxu0 0.0
    %320 = vmatprep.subr.mxu0 0.0
    %321 = vmatpush1.msra.mxu0 0.0
    %322 = vmatprep.subr.mxu0 0.0
    %323 = vmatpush1.msra.mxu0 0.0
    %324 = vmatprep.subr.mxu0 0.0
    %325 = vmatpush1.msra.mxu0 0.0
    %326 = vmatprep.subr.mxu0 0.0
    %327 = vmatpush1.msra.mxu0 0.0
    %328 = vmatprep.subr.mxu0 0.0
    %329 = vmatpush1.msra.mxu0 0.0
    %330 = vmatprep.subr.mxu0 0.0
    %331 = vmatpush1.msra.mxu0 0.0
    %332 = vmatprep.subr.mxu0 0.0
    %333 = vmatpush1.msra.mxu0 0.0
    %334 = vmatprep.subr.mxu0 0.0
    %335 = vmatpush1.msra.mxu0 0.0
    %336 = vmatprep.subr.mxu0 0.0
    %337 = vmatpush1.msra.mxu0 0.0
    %338 = vmatprep.subr.mxu0 0.0
    %339 = vmatpush1.msra.mxu0 0.0
    %340 = vmatprep.subr.mxu0 0.0
    %341 = vmatpush1.msra.mxu0 0.0
    %342 = vmatprep.subr.mxu0 0.0
    %343 = vmatpush1.msra.mxu0 0.0
    %344 = vmatprep.subr.mxu0 0.0
    %345 = vmatpush1.msra.mxu0 0.0
    %346 = vmatprep.mubr.f32.mxu0 0.0
    %347 = vmatmul.mubr.f32.gmra.mrb[0].mxu0 %v257
    %v348 = vpop.f32.mrb[0].mxu0
    %v349 = vadd.f32 %v280, %v348
    %v350 = vpop.f32.mrb[0].mxu0
    %351 = vdwg.mxu0
    %352 = vst [vmem:[%s7] sm:$0xff] %v349
    // Predicated region
    $region38: #{rnn_forward.1} parent=1 // pred_check
      _
    $region39: #{rnn_forward.1} parent=1 // pred_check_branch
      %354 = sbr.rel (0) target = $region41
    $region40: #{rnn_forward.1} parent=1 // pred_region
      _
    $region41: #{rnn_forward.1} parent=1 // pred_fallthru
      _
    // Predicated region
    $region42: #{rnn_forward.1} parent=1 // pred_check
      _
    $region43: #{rnn_forward.1} parent=1 // pred_check_branch
      %356 = sbr.rel (0) target = $region45
    $region44: #{rnn_forward.1} parent=1 // pred_region
      _
    $region45: #{rnn_forward.1} parent=1 // pred_fallthru
      _
    // Predicated region
    $region46: #{rnn_forward.1} parent=1 // pred_check
      _
    $region47: #{rnn_forward.1} parent=1 // pred_check_branch
      %358 = sbr.rel (0) target = $region49
    $region48: #{rnn_forward.1} parent=1 // pred_region
      _
    $region49: #{rnn_forward.1} parent=1 // pred_fallthru
      _
    // Predicated region
    $region50: #{rnn_forward.1} parent=1 // pred_check
      _
    $region51: #{rnn_forward.1} parent=1 // pred_check_branch
      %360 = sbr.rel (0) target = $region53
    $region52: #{rnn_forward.1} parent=1 // pred_region
      _
    $region53: #{rnn_forward.1} parent=1 // pred_fallthru
      _
    %361 = vsyncpa [#allocation3], 1
    %362 = vsyncpa [#allocation5], 1

</llo_original>
